<compile_context>
chip_gen: v5e
topology: v5e:2x2
jax: 0.10.0
libtpu: 0.0.40
codegen_flags: <defaults>
</compile_context>

<pallas_src>
import functools

import jax
import jax.numpy as jnp
from jax import lax
from jax.experimental import pallas as pl
from jax.experimental.pallas import tpu as pltpu


def _lstm_tagger_kernel(tok_ref,      # (T*Bp, 1) int32 token ids (time-major, batch-padded)
                        wfused_ref,   # (V, 4H)   f32  emb @ W_ih^T + (b_ih + b_hh)
                        whh_ref,      # (H, 4H)   bf16 (transposed W_hh)
                        wtag_ref,     # (H, 2)    f32  (transposed hidden2tag weight)
                        btag_ref,     # (1, 2)    f32
                        out_ref,      # (T*Bp, 2) f32 log-probs
                        hs_sc,        # scratch (T*Bp, H) f32  hidden states, all steps
                        *, hidden_dim: int, seq_len: int, batch_pad: int, vocab: int):
    H, T, Bp, V = hidden_dim, seq_len, batch_pad, vocab
    TB = T * Bp

    # ---- fused embedding gather + input projection + bias: ONE lane-dense matmul ----
    # NOTE: out-of-range token ids give an all-zero one-hot row (zero embedding, no bias)
    # instead of raising like nn.Embedding; acceptable for valid inputs.
    tok = tok_ref[...]                                                    # (TB, 1) int32
    onehot = (tok == lax.broadcasted_iota(jnp.int32, (TB, V), 1)).astype(jnp.float32)
    gates_x = jnp.dot(onehot, wfused_ref[...],
                      preferred_element_type=jnp.float32)                 # (TB, 4H)

    whh = whh_ref[...]                                                    # (H, 4H) bf16

    # ---- recurrence (fully unrolled; h_0 = c_0 = 0, PyTorch default) ----
    h = jnp.zeros((Bp, H), jnp.float32)
    c = jnp.zeros((Bp, H), jnp.float32)
    for t in range(T):
        # bf16 operands on the serial-critical recurrent matmul; f32 accumulate.
        g = gates_x[t * Bp:(t + 1) * Bp, :] + jnp.dot(
            h.astype(jnp.bfloat16), whh, preferred_element_type=jnp.float32)  # (Bp, 4H)

        # full 128-lane nonlinearity passes, then slice (PyTorch gate order: i, f, g, o)
        sg = jax.nn.sigmoid(g)
        tg = jnp.tanh(g)
        i_g = sg[:, 0 * H:1 * H]
        f_g = sg[:, 1 * H:2 * H]
        g_g = tg[:, 2 * H:3 * H]
        o_g = sg[:, 3 * H:4 * H]

        c = f_g * c + i_g * g_g
        h = o_g * jnp.tanh(c)
        hs_sc[t * Bp:(t + 1) * Bp, :] = h                                 # static-index store

    # ---- hoisted tag projection + closed-form 2-class log_softmax ----
    tag = jnp.dot(hs_sc[...], wtag_ref[...],
                  preferred_element_type=jnp.float32) + btag_ref[...]     # (TB, 2)
    t0 = tag[:, 0:1]
    t1 = tag[:, 1:2]
    m = jnp.maximum(t0, t1)
    # accurate log1p(x) emulation with supported ops: x if (1+x)==1 else log(1+x)*x/((1+x)-1)
    x = jnp.exp(-jnp.abs(t1 - t0))
    u = 1.0 + x
    log1p_x = jnp.where(u == 1.0, x, jnp.log(u) * (x / (u - 1.0)))
    out_ref[...] = tag - (m + log1p_x)                                    # logaddexp(t0, t1)


def prepare_params(params):
    """One-time parameter prep (hoisted out of the per-call path)."""
    emb = params["embedding"].astype(jnp.float32)                   # (V, E)
    w_ih = params["w_ih"].astype(jnp.float32)                       # (4H, E)
    w_hh = params["w_hh"].astype(jnp.float32)                       # (4H, H)
    b = (params["b_ih"] + params["b_hh"]).astype(jnp.float32)       # (4H,)
    # Fused (V, 4H) table: embedding gather + input projection + bias in one matmul later.
    w_fused = emb @ w_ih.T + b[None, :]
    return {
        "w_fused": w_fused,                                         # (V, 4H)  f32
        "whh_t_bf16": w_hh.T.astype(jnp.bfloat16),                  # (H, 4H)  bf16
        "wtag_t": params["w_tag"].T.astype(jnp.float32),            # (H, 2)   f32
        "btag": params["b_tag"].reshape(1, 2).astype(jnp.float32),  # (1, 2)   f32
    }


@jax.jit
def lstm_tagger_forward(fragment, prep):
    """fragment: (B, T) int32 token ids.  Returns (B, T, 2) f32 log-probs."""
    w_fused = prep["w_fused"]
    whh_t = prep["whh_t_bf16"]
    wtag_t = prep["wtag_t"]
    btag = prep["btag"]

    B, T = fragment.shape
    V = w_fused.shape[0]
    H = whh_t.shape[0]

    # pad batch to a sublane multiple (8); padded rows are independent and sliced away
    SUB = 8
    B_pad = ((B + SUB - 1) // SUB) * SUB

    tok_tm = jnp.transpose(fragment.astype(jnp.int32))              # (T, B)  time-major
    tok_tm = jnp.pad(tok_tm, ((0, 0), (0, B_pad - B)))              # pad with token 0
    tok_flat = tok_tm.reshape(T * B_pad, 1)                         # (T*Bp, 1)

    kernel = functools.partial(_lstm_tagger_kernel, hidden_dim=H, seq_len=T,
                               batch_pad=B_pad, vocab=V)

    vmem = pltpu.MemorySpace.VMEM
    out_flat = pl.pallas_call(
        kernel,
        out_shape=jax.ShapeDtypeStruct((T * B_pad, 2), jnp.float32),
        in_specs=[
            pl.BlockSpec(memory_space=vmem),   # tokens
            pl.BlockSpec(memory_space=vmem),   # fused (V, 4H) emb/W_ih/bias table
            pl.BlockSpec(memory_space=vmem),   # W_hh^T (bf16)
            pl.BlockSpec(memory_space=vmem),   # W_tag^T
            pl.BlockSpec(memory_space=vmem),   # b_tag
        ],
        out_specs=pl.BlockSpec(memory_space=vmem),
        scratch_shapes=[
            pltpu.VMEM((T * B_pad, H), jnp.float32),   # all hidden states
        ],
    )(tok_flat, w_fused, whh_t, wtag_t, btag)

    out_tm = out_flat.reshape(T, B_pad, 2)[:, :B, :]                # (T, B, 2)
    return jnp.transpose(out_tm, (1, 0, 2))                         # (B, T, 2)


def _reference_forward(fragment, params):
    """Pure-JAX f32 reference mirroring the PyTorch module semantics."""
    emb = params["embedding"]
    H = params["w_hh"].shape[1]
    embeds = jnp.take(emb, fragment, axis=0)                        # (B, T, E)
    B = embeds.shape[0]

    wih_t = params["w_ih"].T
    whh_t = params["w_hh"].T
    b = params["b_ih"] + params["b_hh"]

    def step(carry, x_t):
        h, c = carry
        gates = x_t @ wih_t + h @ whh_t + b
        i_g = jax.nn.sigmoid(gates[:, 0 * H:1 * H])
        f_g = jax.nn.sigmoid(gates[:, 1 * H:2 * H])
        g_g = jnp.tanh(gates[:, 2 * H:3 * H])
        o_g = jax.nn.sigmoid(gates[:, 3 * H:4 * H])
        c = f_g * c + i_g * g_g
        h = o_g * jnp.tanh(c)
        return (h, c), h

    h0 = jnp.zeros((B, H), jnp.float32)
    c0 = jnp.zeros((B, H), jnp.float32)
    _, hs = lax.scan(step, (h0, c0), jnp.transpose(embeds, (1, 0, 2)))  # (T, B, H)
    lstm_out = jnp.transpose(hs, (1, 0, 2))                             # (B, T, H)
    tag_space = lstm_out @ params["w_tag"].T + params["b_tag"]
    return jax.nn.log_softmax(tag_space, axis=2)


def init_params(key, vocab_size, embedding_dim, hidden_dim):
    ks = jax.random.split(key, 7)
    bound = 1.0 / jnp.sqrt(hidden_dim)
    return {
        "embedding": jax.random.normal(ks[0], (vocab_size, embedding_dim), jnp.float32),
        "w_ih": jax.random.uniform(ks[1], (4 * hidden_dim, embedding_dim),
                                   jnp.float32, -bound, bound),
        "w_hh": jax.random.uniform(ks[2], (4 * hidden_dim, hidden_dim),
                                   jnp.float32, -bound, bound),
        "b_ih": jax.random.uniform(ks[3], (4 * hidden_dim,), jnp.float32, -bound, bound),
        "b_hh": jax.random.uniform(ks[4], (4 * hidden_dim,), jnp.float32, -bound, bound),
        "w_tag": jax.random.uniform(ks[5], (2, hidden_dim), jnp.float32, -bound, bound),
        "b_tag": jax.random.uniform(ks[6], (2,), jnp.float32, -bound, bound),
    }


if __name__ == "__main__":
    key = jax.random.PRNGKey(0)
    k_param, k_frag = jax.random.split(key)

    VOCAB = 16          # oligo_set_size
    EMBED = 16          # embedding_dim
    HIDDEN = 32         # hidden_dim (4H = 128 = one vreg lane width)
    BATCH = 2
    SEQ = 8

    params = init_params(k_param, VOCAB, EMBED, HIDDEN)
    prep = prepare_params(params)     # one-time param prep (fused table, transposes, bf16 cast)
    fragment = jax.random.randint(k_frag, (BATCH, SEQ), 0, VOCAB, dtype=jnp.int32)

    out = lstm_tagger_forward(fragment, prep)
    out = jax.block_until_ready(out)

    ref = jax.block_until_ready(_reference_forward(fragment, params))
    assert out.shape == (BATCH, SEQ, 2)
    # tolerance relaxed from 1e-4 because the recurrent h@W_hh matmul uses bf16 operands
    # (f32 accumulate) per the perf review; observed deviation is ~1e-2 in the log-probs.
    assert jnp.allclose(out, ref, atol=5e-2, rtol=5e-2), "mismatch vs pure-JAX reference"

    print("KERNEL_OK")
</pallas_src>

<mosaic_0001>
module attributes {stable_mosaic.version = 11 : i64} {
  func.func @_lstm_tagger_kernel(%arg0: memref<64x1xi32, #tpu.memory_space<vmem>>, %arg1: memref<16x128xf32, #tpu.memory_space<vmem>>, %arg2: memref<32x128xbf16, #tpu.memory_space<vmem>>, %arg3: memref<32x2xf32, #tpu.memory_space<vmem>>, %arg4: memref<1x2xf32, #tpu.memory_space<vmem>>, %arg5: memref<64x2xf32, #tpu.memory_space<vmem>>, %arg6: memref<64x32xf32, #tpu.memory_space<vmem>>) attributes {dimension_semantics = [], scalar_prefetch = 0 : i64, scratch_operands = 1 : i64, tpu.core_type = #tpu.core_type<tc>} {
    %c0 = arith.constant 0 : index
    %c0_0 = arith.constant 0 : index
    %0 = vector.load %arg0[%c0, %c0_0] : memref<64x1xi32, #tpu.memory_space<vmem>>, vector<64x1xi32>
    %1 = tpu.iota {dimensions = array<i32: 1>} : vector<64x16xi32>
    %2 = vector.broadcast %0 : vector<64x1xi32> to vector<64x16xi32>
    %3 = arith.cmpi eq, %2, %1 : vector<64x16xi32>
    %4 = arith.extui %3 : vector<64x16xi1> to vector<64x16xi32>
    %5 = arith.sitofp %4 : vector<64x16xi32> to vector<64x16xf32>
    %c0_1 = arith.constant 0 : index
    %c0_2 = arith.constant 0 : index
    %6 = vector.load %arg1[%c0_1, %c0_2] : memref<16x128xf32, #tpu.memory_space<vmem>>, vector<16x128xf32>
    %cst = arith.constant dense<0.000000e+00> : vector<64x128xf32>
    %7 = tpu.matmul %5, %6, %cst {dimension_numbers = #tpu.dot_dimension_numbers<[1], [0], [0], [1], [0, 0, 1, 1], [], []>} : vector<64x16xf32>, vector<16x128xf32>, vector<64x128xf32> -> vector<64x128xf32>
    %c0_3 = arith.constant 0 : index
    %c0_4 = arith.constant 0 : index
    %8 = vector.load %arg2[%c0_3, %c0_4] : memref<32x128xbf16, #tpu.memory_space<vmem>>, vector<32x128xbf16>
    %cst_5 = arith.constant 0.000000e+00 : f32
    %9 = vector.broadcast %cst_5 : f32 to vector<8x32xf32>
    %cst_6 = arith.constant 0.000000e+00 : f32
    %10 = vector.broadcast %cst_6 : f32 to vector<8x32xf32>
    %11 = vector.extract_strided_slice %7 {offsets = [0, 0], sizes = [8, 128], strides = [1, 1]} : vector<64x128xf32> to vector<8x128xf32>
    %12 = arith.truncf %9 : vector<8x32xf32> to vector<8x32xbf16>
    %cst_7 = arith.constant dense<0.000000e+00> : vector<8x128xf32>
    %13 = tpu.matmul %12, %8, %cst_7 {dimension_numbers = #tpu.dot_dimension_numbers<[1], [0], [0], [1], [0, 0, 1, 1], [], []>} : vector<8x32xbf16>, vector<32x128xbf16>, vector<8x128xf32> -> vector<8x128xf32>
    %14 = arith.addf %11, %13 : vector<8x128xf32>
    %15 = arith.negf %14 : vector<8x128xf32>
    %16 = math.exp %15 : vector<8x128xf32>
    %cst_8 = arith.constant 1.000000e+00 : f32
    %17 = vector.broadcast %cst_8 : f32 to vector<8x128xf32>
    %18 = arith.addf %17, %16 : vector<8x128xf32>
    %19 = arith.divf %17, %18 : vector<8x128xf32>
    %20 = math.tanh %14 : vector<8x128xf32>
    %21 = vector.extract_strided_slice %19 {offsets = [0, 0], sizes = [8, 32], strides = [1, 1]} : vector<8x128xf32> to vector<8x32xf32>
    %22 = vector.extract_strided_slice %19 {offsets = [0, 32], sizes = [8, 32], strides = [1, 1]} : vector<8x128xf32> to vector<8x32xf32>
    %23 = vector.extract_strided_slice %20 {offsets = [0, 64], sizes = [8, 32], strides = [1, 1]} : vector<8x128xf32> to vector<8x32xf32>
    %24 = vector.extract_strided_slice %19 {offsets = [0, 96], sizes = [8, 32], strides = [1, 1]} : vector<8x128xf32> to vector<8x32xf32>
    %25 = arith.mulf %22, %10 : vector<8x32xf32>
    %26 = arith.mulf %21, %23 : vector<8x32xf32>
    %27 = arith.addf %25, %26 : vector<8x32xf32>
    %28 = math.tanh %27 : vector<8x32xf32>
    %29 = arith.mulf %24, %28 : vector<8x32xf32>
    %c0_9 = arith.constant 0 : index
    %c0_10 = arith.constant 0 : index
    %30 = vector.load %arg6[%c0_9, %c0_10] : memref<64x32xf32, #tpu.memory_space<vmem>>, vector<8x32xf32>
    tpu.vector_store %arg6[%c0_9, %c0_10], %29 {strides = array<i32>} : memref<64x32xf32, #tpu.memory_space<vmem>>, vector<8x32xf32>,
    %31 = vector.extract_strided_slice %7 {offsets = [8, 0], sizes = [8, 128], strides = [1, 1]} : vector<64x128xf32> to vector<8x128xf32>
    %32 = arith.truncf %29 : vector<8x32xf32> to vector<8x32xbf16>
    %cst_11 = arith.constant dense<0.000000e+00> : vector<8x128xf32>
    %33 = tpu.matmul %32, %8, %cst_11 {dimension_numbers = #tpu.dot_dimension_numbers<[1], [0], [0], [1], [0, 0, 1, 1], [], []>} : vector<8x32xbf16>, vector<32x128xbf16>, vector<8x128xf32> -> vector<8x128xf32>
    %34 = arith.addf %31, %33 : vector<8x128xf32>
    %35 = arith.negf %34 : vector<8x128xf32>
    %36 = math.exp %35 : vector<8x128xf32>
    %cst_12 = arith.constant 1.000000e+00 : f32
    %37 = vector.broadcast %cst_12 : f32 to vector<8x128xf32>
    %38 = arith.addf %37, %36 : vector<8x128xf32>
    %39 = arith.divf %37, %38 : vector<8x128xf32>
    %40 = math.tanh %34 : vector<8x128xf32>
    %41 = vector.extract_strided_slice %39 {offsets = [0, 0], sizes = [8, 32], strides = [1, 1]} : vector<8x128xf32> to vector<8x32xf32>
    %42 = vector.extract_strided_slice %39 {offsets = [0, 32], sizes = [8, 32], strides = [1, 1]} : vector<8x128xf32> to vector<8x32xf32>
    %43 = vector.extract_strided_slice %40 {offsets = [0, 64], sizes = [8, 32], strides = [1, 1]} : vector<8x128xf32> to vector<8x32xf32>
    %44 = vector.extract_strided_slice %39 {offsets = [0, 96], sizes = [8, 32], strides = [1, 1]} : vector<8x128xf32> to vector<8x32xf32>
    %45 = arith.mulf %42, %27 : vector<8x32xf32>
    %46 = arith.mulf %41, %43 : vector<8x32xf32>
    %47 = arith.addf %45, %46 : vector<8x32xf32>
    %48 = math.tanh %47 : vector<8x32xf32>
    %49 = arith.mulf %44, %48 : vector<8x32xf32>
    %c8 = arith.constant 8 : index
    %c0_13 = arith.constant 0 : index
    %50 = vector.load %arg6[%c8, %c0_13] : memref<64x32xf32, #tpu.memory_space<vmem>>, vector<8x32xf32>
    tpu.vector_store %arg6[%c8, %c0_13], %49 {strides = array<i32>} : memref<64x32xf32, #tpu.memory_space<vmem>>, vector<8x32xf32>,
    %51 = vector.extract_strided_slice %7 {offsets = [16, 0], sizes = [8, 128], strides = [1, 1]} : vector<64x128xf32> to vector<8x128xf32>
    %52 = arith.truncf %49 : vector<8x32xf32> to vector<8x32xbf16>
    %cst_14 = arith.constant dense<0.000000e+00> : vector<8x128xf32>
    %53 = tpu.matmul %52, %8, %cst_14 {dimension_numbers = #tpu.dot_dimension_numbers<[1], [0], [0], [1], [0, 0, 1, 1], [], []>} : vector<8x32xbf16>, vector<32x128xbf16>, vector<8x128xf32> -> vector<8x128xf32>
    %54 = arith.addf %51, %53 : vector<8x128xf32>
    %55 = arith.negf %54 : vector<8x128xf32>
    %56 = math.exp %55 : vector<8x128xf32>
    %cst_15 = arith.constant 1.000000e+00 : f32
    %57 = vector.broadcast %cst_15 : f32 to vector<8x128xf32>
    %58 = arith.addf %57, %56 : vector<8x128xf32>
    %59 = arith.divf %57, %58 : vector<8x128xf32>
    %60 = math.tanh %54 : vector<8x128xf32>
    %61 = vector.extract_strided_slice %59 {offsets = [0, 0], sizes = [8, 32], strides = [1, 1]} : vector<8x128xf32> to vector<8x32xf32>
    %62 = vector.extract_strided_slice %59 {offsets = [0, 32], sizes = [8, 32], strides = [1, 1]} : vector<8x128xf32> to vector<8x32xf32>
    %63 = vector.extract_strided_slice %60 {offsets = [0, 64], sizes = [8, 32], strides = [1, 1]} : vector<8x128xf32> to vector<8x32xf32>
    %64 = vector.extract_strided_slice %59 {offsets = [0, 96], sizes = [8, 32], strides = [1, 1]} : vector<8x128xf32> to vector<8x32xf32>
    %65 = arith.mulf %62, %47 : vector<8x32xf32>
    %66 = arith.mulf %61, %63 : vector<8x32xf32>
    %67 = arith.addf %65, %66 : vector<8x32xf32>
    %68 = math.tanh %67 : vector<8x32xf32>
    %69 = arith.mulf %64, %68 : vector<8x32xf32>
    %c16 = arith.constant 16 : index
    %c0_16 = arith.constant 0 : index
    %70 = vector.load %arg6[%c16, %c0_16] : memref<64x32xf32, #tpu.memory_space<vmem>>, vector<8x32xf32>
    tpu.vector_store %arg6[%c16, %c0_16], %69 {strides = array<i32>} : memref<64x32xf32, #tpu.memory_space<vmem>>, vector<8x32xf32>,
    %71 = vector.extract_strided_slice %7 {offsets = [24, 0], sizes = [8, 128], strides = [1, 1]} : vector<64x128xf32> to vector<8x128xf32>
    %72 = arith.truncf %69 : vector<8x32xf32> to vector<8x32xbf16>
    %cst_17 = arith.constant dense<0.000000e+00> : vector<8x128xf32>
    %73 = tpu.matmul %72, %8, %cst_17 {dimension_numbers = #tpu.dot_dimension_numbers<[1], [0], [0], [1], [0, 0, 1, 1], [], []>} : vector<8x32xbf16>, vector<32x128xbf16>, vector<8x128xf32> -> vector<8x128xf32>
    %74 = arith.addf %71, %73 : vector<8x128xf32>
    %75 = arith.negf %74 : vector<8x128xf32>
    %76 = math.exp %75 : vector<8x128xf32>
    %cst_18 = arith.constant 1.000000e+00 : f32
    %77 = vector.broadcast %cst_18 : f32 to vector<8x128xf32>
    %78 = arith.addf %77, %76 : vector<8x128xf32>
    %79 = arith.divf %77, %78 : vector<8x128xf32>
    %80 = math.tanh %74 : vector<8x128xf32>
    %81 = vector.extract_strided_slice %79 {offsets = [0, 0], sizes = [8, 32], strides = [1, 1]} : vector<8x128xf32> to vector<8x32xf32>
    %82 = vector.extract_strided_slice %79 {offsets = [0, 32], sizes = [8, 32], strides = [1, 1]} : vector<8x128xf32> to vector<8x32xf32>
    %83 = vector.extract_strided_slice %80 {offsets = [0, 64], sizes = [8, 32], strides = [1, 1]} : vector<8x128xf32> to vector<8x32xf32>
    %84 = vector.extract_strided_slice %79 {offsets = [0, 96], sizes = [8, 32], strides = [1, 1]} : vector<8x128xf32> to vector<8x32xf32>
    %85 = arith.mulf %82, %67 : vector<8x32xf32>
    %86 = arith.mulf %81, %83 : vector<8x32xf32>
    %87 = arith.addf %85, %86 : vector<8x32xf32>
    %88 = math.tanh %87 : vector<8x32xf32>
    %89 = arith.mulf %84, %88 : vector<8x32xf32>
    %c24 = arith.constant 24 : index
    %c0_19 = arith.constant 0 : index
    %90 = vector.load %arg6[%c24, %c0_19] : memref<64x32xf32, #tpu.memory_space<vmem>>, vector<8x32xf32>
    tpu.vector_store %arg6[%c24, %c0_19], %89 {strides = array<i32>} : memref<64x32xf32, #tpu.memory_space<vmem>>, vector<8x32xf32>,
    %91 = vector.extract_strided_slice %7 {offsets = [32, 0], sizes = [8, 128], strides = [1, 1]} : vector<64x128xf32> to vector<8x128xf32>
    %92 = arith.truncf %89 : vector<8x32xf32> to vector<8x32xbf16>
    %cst_20 = arith.constant dense<0.000000e+00> : vector<8x128xf32>
    %93 = tpu.matmul %92, %8, %cst_20 {dimension_numbers = #tpu.dot_dimension_numbers<[1], [0], [0], [1], [0, 0, 1, 1], [], []>} : vector<8x32xbf16>, vector<32x128xbf16>, vector<8x128xf32> -> vector<8x128xf32>
    %94 = arith.addf %91, %93 : vector<8x128xf32>
    %95 = arith.negf %94 : vector<8x128xf32>
    %96 = math.exp %95 : vector<8x128xf32>
    %cst_21 = arith.constant 1.000000e+00 : f32
    %97 = vector.broadcast %cst_21 : f32 to vector<8x128xf32>
    %98 = arith.addf %97, %96 : vector<8x128xf32>
    %99 = arith.divf %97, %98 : vector<8x128xf32>
    %100 = math.tanh %94 : vector<8x128xf32>
    %101 = vector.extract_strided_slice %99 {offsets = [0, 0], sizes = [8, 32], strides = [1, 1]} : vector<8x128xf32> to vector<8x32xf32>
    %102 = vector.extract_strided_slice %99 {offsets = [0, 32], sizes = [8, 32], strides = [1, 1]} : vector<8x128xf32> to vector<8x32xf32>
    %103 = vector.extract_strided_slice %100 {offsets = [0, 64], sizes = [8, 32], strides = [1, 1]} : vector<8x128xf32> to vector<8x32xf32>
    %104 = vector.extract_strided_slice %99 {offsets = [0, 96], sizes = [8, 32], strides = [1, 1]} : vector<8x128xf32> to vector<8x32xf32>
    %105 = arith.mulf %102, %87 : vector<8x32xf32>
    %106 = arith.mulf %101, %103 : vector<8x32xf32>
    %107 = arith.addf %105, %106 : vector<8x32xf32>
    %108 = math.tanh %107 : vector<8x32xf32>
    %109 = arith.mulf %104, %108 : vector<8x32xf32>
    %c32 = arith.constant 32 : index
    %c0_22 = arith.constant 0 : index
    %110 = vector.load %arg6[%c32, %c0_22] : memref<64x32xf32, #tpu.memory_space<vmem>>, vector<8x32xf32>
    tpu.vector_store %arg6[%c32, %c0_22], %109 {strides = array<i32>} : memref<64x32xf32, #tpu.memory_space<vmem>>, vector<8x32xf32>,
    %111 = vector.extract_strided_slice %7 {offsets = [40, 0], sizes = [8, 128], strides = [1, 1]} : vector<64x128xf32> to vector<8x128xf32>
    %112 = arith.truncf %109 : vector<8x32xf32> to vector<8x32xbf16>
    %cst_23 = arith.constant dense<0.000000e+00> : vector<8x128xf32>
    %113 = tpu.matmul %112, %8, %cst_23 {dimension_numbers = #tpu.dot_dimension_numbers<[1], [0], [0], [1], [0, 0, 1, 1], [], []>} : vector<8x32xbf16>, vector<32x128xbf16>, vector<8x128xf32> -> vector<8x128xf32>
    %114 = arith.addf %111, %113 : vector<8x128xf32>
    %115 = arith.negf %114 : vector<8x128xf32>
    %116 = math.exp %115 : vector<8x128xf32>
    %cst_24 = arith.constant 1.000000e+00 : f32
    %117 = vector.broadcast %cst_24 : f32 to vector<8x128xf32>
    %118 = arith.addf %117, %116 : vector<8x128xf32>
    %119 = arith.divf %117, %118 : vector<8x128xf32>
    %120 = math.tanh %114 : vector<8x128xf32>
    %121 = vector.extract_strided_slice %119 {offsets = [0, 0], sizes = [8, 32], strides = [1, 1]} : vector<8x128xf32> to vector<8x32xf32>
    %122 = vector.extract_strided_slice %119 {offsets = [0, 32], sizes = [8, 32], strides = [1, 1]} : vector<8x128xf32> to vector<8x32xf32>
    %123 = vector.extract_strided_slice %120 {offsets = [0, 64], sizes = [8, 32], strides = [1, 1]} : vector<8x128xf32> to vector<8x32xf32>
    %124 = vector.extract_strided_slice %119 {offsets = [0, 96], sizes = [8, 32], strides = [1, 1]} : vector<8x128xf32> to vector<8x32xf32>
    %125 = arith.mulf %122, %107 : vector<8x32xf32>
    %126 = arith.mulf %121, %123 : vector<8x32xf32>
    %127 = arith.addf %125, %126 : vector<8x32xf32>
    %128 = math.tanh %127 : vector<8x32xf32>
    %129 = arith.mulf %124, %128 : vector<8x32xf32>
    %c40 = arith.constant 40 : index
    %c0_25 = arith.constant 0 : index
    %130 = vector.load %arg6[%c40, %c0_25] : memref<64x32xf32, #tpu.memory_space<vmem>>, vector<8x32xf32>
    tpu.vector_store %arg6[%c40, %c0_25], %129 {strides = array<i32>} : memref<64x32xf32, #tpu.memory_space<vmem>>, vector<8x32xf32>,
    %131 = vector.extract_strided_slice %7 {offsets = [48, 0], sizes = [8, 128], strides = [1, 1]} : vector<64x128xf32> to vector<8x128xf32>
    %132 = arith.truncf %129 : vector<8x32xf32> to vector<8x32xbf16>
    %cst_26 = arith.constant dense<0.000000e+00> : vector<8x128xf32>
    %133 = tpu.matmul %132, %8, %cst_26 {dimension_numbers = #tpu.dot_dimension_numbers<[1], [0], [0], [1], [0, 0, 1, 1], [], []>} : vector<8x32xbf16>, vector<32x128xbf16>, vector<8x128xf32> -> vector<8x128xf32>
    %134 = arith.addf %131, %133 : vector<8x128xf32>
    %135 = arith.negf %134 : vector<8x128xf32>
    %136 = math.exp %135 : vector<8x128xf32>
    %cst_27 = arith.constant 1.000000e+00 : f32
    %137 = vector.broadcast %cst_27 : f32 to vector<8x128xf32>
    %138 = arith.addf %137, %136 : vector<8x128xf32>
    %139 = arith.divf %137, %138 : vector<8x128xf32>
    %140 = math.tanh %134 : vector<8x128xf32>
    %141 = vector.extract_strided_slice %139 {offsets = [0, 0], sizes = [8, 32], strides = [1, 1]} : vector<8x128xf32> to vector<8x32xf32>
    %142 = vector.extract_strided_slice %139 {offsets = [0, 32], sizes = [8, 32], strides = [1, 1]} : vector<8x128xf32> to vector<8x32xf32>
    %143 = vector.extract_strided_slice %140 {offsets = [0, 64], sizes = [8, 32], strides = [1, 1]} : vector<8x128xf32> to vector<8x32xf32>
    %144 = vector.extract_strided_slice %139 {offsets = [0, 96], sizes = [8, 32], strides = [1, 1]} : vector<8x128xf32> to vector<8x32xf32>
    %145 = arith.mulf %142, %127 : vector<8x32xf32>
    %146 = arith.mulf %141, %143 : vector<8x32xf32>
    %147 = arith.addf %145, %146 : vector<8x32xf32>
    %148 = math.tanh %147 : vector<8x32xf32>
    %149 = arith.mulf %144, %148 : vector<8x32xf32>
    %c48 = arith.constant 48 : index
    %c0_28 = arith.constant 0 : index
    %150 = vector.load %arg6[%c48, %c0_28] : memref<64x32xf32, #tpu.memory_space<vmem>>, vector<8x32xf32>
    tpu.vector_store %arg6[%c48, %c0_28], %149 {strides = array<i32>} : memref<64x32xf32, #tpu.memory_space<vmem>>, vector<8x32xf32>,
    %151 = vector.extract_strided_slice %7 {offsets = [56, 0], sizes = [8, 128], strides = [1, 1]} : vector<64x128xf32> to vector<8x128xf32>
    %152 = arith.truncf %149 : vector<8x32xf32> to vector<8x32xbf16>
    %cst_29 = arith.constant dense<0.000000e+00> : vector<8x128xf32>
    %153 = tpu.matmul %152, %8, %cst_29 {dimension_numbers = #tpu.dot_dimension_numbers<[1], [0], [0], [1], [0, 0, 1, 1], [], []>} : vector<8x32xbf16>, vector<32x128xbf16>, vector<8x128xf32> -> vector<8x128xf32>
    %154 = arith.addf %151, %153 : vector<8x128xf32>
    %155 = arith.negf %154 : vector<8x128xf32>
    %156 = math.exp %155 : vector<8x128xf32>
    %cst_30 = arith.constant 1.000000e+00 : f32
    %157 = vector.broadcast %cst_30 : f32 to vector<8x128xf32>
    %158 = arith.addf %157, %156 : vector<8x128xf32>
    %159 = arith.divf %157, %158 : vector<8x128xf32>
    %160 = math.tanh %154 : vector<8x128xf32>
    %161 = vector.extract_strided_slice %159 {offsets = [0, 0], sizes = [8, 32], strides = [1, 1]} : vector<8x128xf32> to vector<8x32xf32>
    %162 = vector.extract_strided_slice %159 {offsets = [0, 32], sizes = [8, 32], strides = [1, 1]} : vector<8x128xf32> to vector<8x32xf32>
    %163 = vector.extract_strided_slice %160 {offsets = [0, 64], sizes = [8, 32], strides = [1, 1]} : vector<8x128xf32> to vector<8x32xf32>
    %164 = vector.extract_strided_slice %159 {offsets = [0, 96], sizes = [8, 32], strides = [1, 1]} : vector<8x128xf32> to vector<8x32xf32>
    %165 = arith.mulf %162, %147 : vector<8x32xf32>
    %166 = arith.mulf %161, %163 : vector<8x32xf32>
    %167 = arith.addf %165, %166 : vector<8x32xf32>
    %168 = math.tanh %167 : vector<8x32xf32>
    %169 = arith.mulf %164, %168 : vector<8x32xf32>
    %c56 = arith.constant 56 : index
    %c0_31 = arith.constant 0 : index
    %170 = vector.load %arg6[%c56, %c0_31] : memref<64x32xf32, #tpu.memory_space<vmem>>, vector<8x32xf32>
    tpu.vector_store %arg6[%c56, %c0_31], %169 {strides = array<i32>} : memref<64x32xf32, #tpu.memory_space<vmem>>, vector<8x32xf32>,
    %c0_32 = arith.constant 0 : index
    %c0_33 = arith.constant 0 : index
    %171 = vector.load %arg6[%c0_32, %c0_33] : memref<64x32xf32, #tpu.memory_space<vmem>>, vector<64x32xf32>
    %c0_34 = arith.constant 0 : index
    %c0_35 = arith.constant 0 : index
    %172 = vector.load %arg3[%c0_34, %c0_35] : memref<32x2xf32, #tpu.memory_space<vmem>>, vector<32x2xf32>
    %cst_36 = arith.constant dense<0.000000e+00> : vector<64x2xf32>
    %173 = tpu.matmul %171, %172, %cst_36 {dimension_numbers = #tpu.dot_dimension_numbers<[1], [0], [0], [1], [0, 0, 1, 1], [], []>} : vector<64x32xf32>, vector<32x2xf32>, vector<64x2xf32> -> vector<64x2xf32>
    %c0_37 = arith.constant 0 : index
    %c0_38 = arith.constant 0 : index
    %174 = vector.load %arg4[%c0_37, %c0_38] : memref<1x2xf32, #tpu.memory_space<vmem>>, vector<1x2xf32>
    %175 = vector.broadcast %174 : vector<1x2xf32> to vector<64x2xf32>
    %176 = arith.addf %173, %175 : vector<64x2xf32>
    %177 = vector.extract_strided_slice %176 {offsets = [0, 0], sizes = [64, 1], strides = [1, 1]} : vector<64x2xf32> to vector<64x1xf32>
    %178 = vector.extract_strided_slice %176 {offsets = [0, 1], sizes = [64, 1], strides = [1, 1]} : vector<64x2xf32> to vector<64x1xf32>
    %179 = arith.maximumf %177, %178 : vector<64x1xf32>
    %180 = arith.subf %178, %177 : vector<64x1xf32>
    %181 = math.absf %180 : vector<64x1xf32>
    %cst_39 = arith.constant 0.000000e+00 : f32
    %182 = vector.broadcast %cst_39 : f32 to vector<64x1xf32>
    %183 = arith.subf %182, %181 : vector<64x1xf32>
    %184 = math.exp %183 : vector<64x1xf32>
    %cst_40 = arith.constant 1.000000e+00 : f32
    %185 = vector.broadcast %cst_40 : f32 to vector<64x1xf32>
    %186 = arith.addf %185, %184 : vector<64x1xf32>
    %cst_41 = arith.constant 1.000000e+00 : f32
    %187 = vector.broadcast %cst_41 : f32 to vector<64x1xf32>
    %188 = arith.cmpf oeq, %186, %187 : vector<64x1xf32>
    %189 = math.log %186 : vector<64x1xf32>
    %cst_42 = arith.constant 1.000000e+00 : f32
    %190 = vector.broadcast %cst_42 : f32 to vector<64x1xf32>
    %191 = arith.subf %186, %190 : vector<64x1xf32>
    %192 = arith.divf %184, %191 : vector<64x1xf32>
    %193 = arith.mulf %189, %192 : vector<64x1xf32>
    %194 = arith.select %188, %184, %193 : vector<64x1xi1>, vector<64x1xf32>
    %195 = arith.addf %179, %194 : vector<64x1xf32>
    %196 = vector.broadcast %195 : vector<64x1xf32> to vector<64x2xf32>
    %197 = arith.subf %176, %196 : vector<64x2xf32>
    %c0_43 = arith.constant 0 : index
    %c0_44 = arith.constant 0 : index
    %198 = vector.load %arg5[%c0_43, %c0_44] : memref<64x2xf32, #tpu.memory_space<vmem>>, vector<64x2xf32>
    tpu.vector_store %arg5[%c0_43, %c0_44], %197 {strides = array<i32>} : memref<64x2xf32, #tpu.memory_space<vmem>>, vector<64x2xf32>,
    return
  }
}

</mosaic_0001>

<llo_original>
// kernel: lstm_tagger_forward.1
$region0: #{lstm_tagger_forward.1}
  #allocation0 [shape = 'u32[]', space=smem, size = 0x4, offset = 0x4, fixed_abs, tag = 'smem constant byte address 0x4 - core index']
  #allocation1 [shape = 'u32[72,128]{1,0:T(1,128)}', space=vmem, size = 0x9000, scoped, tag = 'internal scratch']
  #allocation2 [shape = 'f32[64,32]{1,0:T(8,128)}', space=vmem, size = 0x8000, scoped, tag = 'scratch operand']
  %s0 = inlined_call_operand.vmem [shape: s32[64,1], index: 0, kind: input, shape index: {}]
  %s1 = inlined_call_operand.vmem [shape: f32[16,128], index: 1, kind: input, shape index: {}]
  %s2 = inlined_call_operand.vmem [shape: bf16[32,128], index: 2, kind: input, shape index: {}]
  %s3 = inlined_call_operand.vmem [shape: f32[32,2], index: 3, kind: input, shape index: {}]
  %s4 = inlined_call_operand.vmem [shape: f32[1,2], index: 4, kind: input, shape index: {}]
  %s5 = inlined_call_operand.vmem [shape: f32[64,2], index: 5, kind: output, shape index: {}]
  %s6 = sld [smem:[#allocation0]]
  $region30: #{lstm_tagger_forward.1} parent=0
    _
  %s8 = ssub.s32 1, %s6
  %s9 = scalar_select 0, %s8, %s6
  // Predicated region
  $region2: #{lstm_tagger_forward.1} parent=0 // pred_check
    _
  $region3: #{lstm_tagger_forward.1} parent=0 // pred_check_branch
    %11 = sbr.rel (0) target = $region5
  $region4: #{lstm_tagger_forward.1} parent=0 // pred_region
    _
  $region5: #{lstm_tagger_forward.1} parent=0 // pred_fallthru
    _
  // Predicated region
  $region6: #{lstm_tagger_forward.1} parent=0 // pred_check
    _
  $region7: #{lstm_tagger_forward.1} parent=0 // pred_check_branch
    %13 = sbr.rel (0) target = $region9
  $region8: #{lstm_tagger_forward.1} parent=0 // pred_region
    _
  $region9: #{lstm_tagger_forward.1} parent=0 // pred_fallthru
    _
  // Predicated region
  $region10: #{lstm_tagger_forward.1} parent=0 // pred_check
    _
  $region11: #{lstm_tagger_forward.1} parent=0 // pred_check_branch
    %15 = sbr.rel (0) target = $region13
  $region12: #{lstm_tagger_forward.1} parent=0 // pred_region
    _
  $region13: #{lstm_tagger_forward.1} parent=0 // pred_fallthru
    _
  // Predicated region
  $region14: #{lstm_tagger_forward.1} parent=0 // pred_check
    _
  $region15: #{lstm_tagger_forward.1} parent=0 // pred_check_branch
    %17 = sbr.rel (0) target = $region17
  $region16: #{lstm_tagger_forward.1} parent=0 // pred_region
    _
  $region17: #{lstm_tagger_forward.1} parent=0 // pred_fallthru
    _
  // Predicated region
  $region18: #{lstm_tagger_forward.1} parent=0 // pred_check
    _
  $region19: #{lstm_tagger_forward.1} parent=0 // pred_check_branch
    %19 = sbr.rel (0) target = $region21
  $region20: #{lstm_tagger_forward.1} parent=0 // pred_region
    _
  $region21: #{lstm_tagger_forward.1} parent=0 // pred_fallthru
    _
  %v21 = vld [vmem:[%s0] sm:$0xff]
  %v22 = vld [vmem:[%s0 + $0x8] sm:$0xff]
  %v23 = vld [vmem:[%s0 + $0x10] sm:$0xff]
  %v24 = vld [vmem:[%s0 + $0x18] sm:$0xff]
  %v25 = vld [vmem:[%s0 + $0x20] sm:$0xff]
  %v26 = vld [vmem:[%s0 + $0x28] sm:$0xff]
  %v27 = vld [vmem:[%s0 + $0x30] sm:$0xff]
  %v28 = vld [vmem:[%s0 + $0x38] sm:$0xff]
  %v29 = vlaneseq
  %v30 = vand.u32 %v29, 127
  %31 = vset.pattern.permute.xlu0 0
  %32 = vperm.xlu0 %31, %v21
  %v33 = vpop.permute.xlu0 %32
  %34 = vset.pattern.permute.xlu0 0
  %35 = vperm.xlu0 %34, %v22
  %v36 = vpop.permute.xlu0 %35
  %37 = vset.pattern.permute.xlu0 0
  %38 = vperm.xlu0 %37, %v23
  %v39 = vpop.permute.xlu0 %38
  %40 = vset.pattern.permute.xlu0 0
  %41 = vperm.xlu0 %40, %v24
  %v42 = vpop.permute.xlu0 %41
  %43 = vset.pattern.permute.xlu0 0
  %44 = vperm.xlu0 %43, %v25
  %v45 = vpop.permute.xlu0 %44
  %46 = vset.pattern.permute.xlu0 0
  %47 = vperm.xlu0 %46, %v26
  %v48 = vpop.permute.xlu0 %47
  %49 = vset.pattern.permute.xlu0 0
  %50 = vperm.xlu0 %49, %v27
  %v51 = vpop.permute.xlu0 %50
  %52 = vset.pattern.permute.xlu0 0
  %53 = vperm.xlu0 %52, %v28
  %v54 = vpop.permute.xlu0 %53
  %vm55 = vcmp.eq.s32.totalorder %v33, %v30
  %vm56 = vcmp.eq.s32.totalorder %v36, %v30
  %vm57 = vcmp.eq.s32.totalorder %v39, %v30
  %vm58 = vcmp.eq.s32.totalorder %v42, %v30
  %vm59 = vcmp.eq.s32.totalorder %v45, %v30
  %vm60 = vcmp.eq.s32.totalorder %v48, %v30
  %vm61 = vcmp.eq.s32.totalorder %v51, %v30
  %vm62 = vcmp.eq.s32.totalorder %v54, %v30
  %v63 = vsel %vm55, 1, 0
  %v64 = vsel %vm56, 1, 0
  %v65 = vsel %vm57, 1, 0
  %v66 = vsel %vm58, 1, 0
  %v67 = vsel %vm59, 1, 0
  %v68 = vsel %vm60, 1, 0
  %v69 = vsel %vm61, 1, 0
  %v70 = vsel %vm62, 1, 0
  %v71 = vcvt.s32.f32 %v63
  %v72 = vcvt.s32.f32 %v64
  %v73 = vcvt.s32.f32 %v65
  %v74 = vcvt.s32.f32 %v66
  %v75 = vcvt.s32.f32 %v67
  %v76 = vcvt.s32.f32 %v68
  %v77 = vcvt.s32.f32 %v69
  %v78 = vcvt.s32.f32 %v70
  %v79 = vld [vmem:[%s1] sm:$0xff]
  %v80 = vld [vmem:[%s1 + $0x8] sm:$0xff]
  %vm81 = vcmask 130048
  %v83 = vsel %vm81, %v71, 0
  %v86 = vsel %vm81, %v72, 0
  %v89 = vsel %vm81, %v73, 0
  %v92 = vsel %vm81, %v74, 0
  %v95 = vsel %vm81, %v75, 0
  %v98 = vsel %vm81, %v76, 0
  %v101 = vsel %vm81, %v77, 0
  %v104 = vsel %vm81, %v78, 0
  %106 = vmatpush.msra.mxu0 0.0
  %107 = vmatpush.msra.mxu0 0.0
  %108 = vmatpush.msra.mxu0 0.0
  %109 = vmatpush.msra.mxu0 0.0
  %110 = vmatpush.msra.mxu0 0.0
  %111 = vmatpush.msra.mxu0 0.0
  %112 = vmatpush.msra.mxu0 0.0
  %113 = vmatpush.msra.mxu0 0.0
  %114 = vmatpush.msra.mxu0 0.0
  %115 = vmatpush.msra.mxu0 0.0
  %116 = vmatpush.msra.mxu0 0.0
  %117 = vmatpush.msra.mxu0 0.0
  %118 = vmatpush.msra.mxu0 0.0
  %119 = vmatpush.msra.mxu0 0.0
  %120 = vmatpush.msra.mxu0 %v80
  %121 = vmatpush.msra.mxu0 %v79
  %122 = vmatmul.f32.gmra.mxu0 %v83
  %v123 = vpop.f32.mrf.mxu0
  %v124 = vadd.f32 0.0, %v123
  %125 = vmatmul.f32.gmra.mxu0 %v86
  %v126 = vpop.f32.mrf.mxu0
  %v127 = vadd.f32 0.0, %v126
  %128 = vmatmul.f32.gmra.mxu0 %v89
  %v129 = vpop.f32.mrf.mxu0
  %v130 = vadd.f32 0.0, %v129
  %131 = vmatmul.f32.gmra.mxu0 %v92
  %v132 = vpop.f32.mrf.mxu0
  %v133 = vadd.f32 0.0, %v132
  %134 = vmatmul.f32.gmra.mxu0 %v95
  %v135 = vpop.f32.mrf.mxu0
  %v136 = vadd.f32 0.0, %v135
  %137 = vmatmul.f32.gmra.mxu0 %v98
  %v138 = vpop.f32.mrf.mxu0
  %v139 = vadd.f32 0.0, %v138
  %140 = vmatmul.f32.gmra.mxu0 %v101
  %v141 = vpop.f32.mrf.mxu0
  %v142 = vadd.f32 0.0, %v141
  %143 = vmatmul.f32.gmra.mxu0 %v104
  %v144 = vpop.f32.mrf.mxu0
  %v145 = vadd.f32 0.0, %v144
  %146 = vdwg.mxu0
  %v147 = vld [vmem:[%s2] sm:$0xf]
  %v148 = vld [vmem:[%s2 + $0x4] sm:$0xf]
  %v149 = vld [vmem:[%s2 + $0x8] sm:$0xf]
  %v150 = vld [vmem:[%s2 + $0xc] sm:$0xf]
  %v155 = vunpack.c.l.b16 %v147
  %v156 = vunpack.c.l.b16 %v148
  %v157 = vunpack.c.l.b16 %v149
  %v158 = vunpack.c.l.b16 %v150
  %v159 = vpack.c.b16 %v156, %v155
  %v160 = vpack.c.b16 %v158, %v157
  %vm163 = vcmask 261120
  %v165 = vsel %vm163, 0, 0
  %167 = vmatpush.bf16.msra.mxu0 0
  %168 = vmatpush.bf16.msra.mxu0 0
  %169 = vmatpush.bf16.msra.mxu0 0
  %170 = vmatpush.bf16.msra.mxu0 0
  %171 = vmatpush.bf16.msra.mxu0 0
  %172 = vmatpush.bf16.msra.mxu0 0
  %173 = vmatpush.bf16.msra.mxu0 %v160
  %174 = vmatpush.bf16.msra.mxu0 %v159
  %175 = vmatmul.bf16.gmra.mxu0 %v165
  %v176 = vpop.f32.mrf.mxu0
  %v177 = vadd.f32 0.0, %v176
  %v178 = vpop.f32.mrf.mxu0
  %179 = vdwg.mxu0
  %v180 = vadd.f32 %v124, %v177
  %v181 = vxor.u32 %v180, 2147483648
  %v182 = vmul.f32 %v181, 1.442695
  %v183 = vpow.pop %v182
  %v184 = vadd.f32 %v183, 1.0
  %v185 = vrcp.pop %v184
  %v186 = vmul.f32 %v184, %v185
  %v187 = vsub.f32 1.0, %v186
  %v188 = vmul.f32 %v185, %v187
  %v189 = vadd.f32 %v185, %v188
  %vm190 = vweird.f32 %v184
  %vm191 = vweird.f32 %v185
  %vm192 = vmor %vm190, %vm191
  %v193 = vsel %vm192, %v185, %v189
  %v194 = vand.u32 2147483647, %v184
  %vm195 = vcmp.eq.f32.partialorder %v194, 8.507059e+37
  %v196 = vand.u32 %v184, 2147483648
  %v197 = vor.u32 1.1754944e-38, %v196
  %v198 = vsel %vm195, %v197, %v193
  %v199 = vmul.f32 1.0, %v198
  %v200 = vtanh.pop %v180
  %v201 = vmul.f32 %v199, 0.0
  %203 = vrot.lane.b32.xlu0 %v200, 64
  %v204 = vpop.permute.xlu0 %203
  %v206 = vmul.f32 %v199, %v204
  %208 = vrot.lane.b32.xlu0 %v206, 32
  %v209 = vpop.permute.xlu0 %208
  %v211 = vadd.f32 %v201, %v209
  %v212 = vtanh.pop %v211
  %214 = vrot.lane.b32.xlu0 %v212, 64
  %v215 = vpop.permute.xlu0 %214
  %v217 = vmul.f32 %v199, %v215
  %219 = vrot.lane.b32.xlu0 %v217, 32
  %v220 = vpop.permute.xlu0 %219
  %222 = vst.msk [vmem:[#allocation2] sm:$0xff] %vm163, %v220
  %v223 = vpack.c.bf16 %v217, %v217
  %225 = vrot.lane.b32.xlu0 %v223, 32
  %v226 = vpop.permute.xlu0 %225
  %v228 = vsel %vm163, %v226, 0
  %230 = vmatpush.bf16.msra.mxu0 0
  %231 = vmatpush.bf16.msra.mxu0 0
  %232 = vmatpush.bf16.msra.mxu0 0
  %233 = vmatpush.bf16.msra.mxu0 0
  %234 = vmatpush.bf16.msra.mxu0 0
  %235 = vmatpush.bf16.msra.mxu0 0
  %236 = vmatpush.bf16.msra.mxu0 %v160
  %237 = vmatpush.bf16.msra.mxu0 %v159
  %238 = vmatmul.bf16.gmra.mxu0 %v228
  %v239 = vpop.f32.mrf.mxu0
  %v240 = vadd.f32 0.0, %v239
  %v241 = vpop.f32.mrf.mxu0
  %242 = vdwg.mxu0
  %v243 = vadd.f32 %v127, %v240
  %v244 = vxor.u32 %v243, 2147483648
  %v245 = vmul.f32 %v244, 1.442695
  %v246 = vpow.pop %v245
  %v247 = vadd.f32 %v246, 1.0
  %v248 = vrcp.pop %v247
  %v249 = vmul.f32 %v247, %v248
  %v250 = vsub.f32 1.0, %v249
  %v251 = vmul.f32 %v248, %v250
  %v252 = vadd.f32 %v248, %v251
  %vm253 = vweird.f32 %v247
  %vm254 = vweird.f32 %v248
  %vm255 = vmor %vm253, %vm254
  %v256 = vsel %vm255, %v248, %v252
  %v257 = vand.u32 2147483647, %v247
  %vm258 = vcmp.eq.f32.partialorder %v257, 8.507059e+37
  %v259 = vand.u32 %v247, 2147483648
  %v260 = vor.u32 1.1754944e-38, %v259
  %v261 = vsel %vm258, %v260, %v256
  %v262 = vmul.f32 1.0, %v261
  %v263 = vtanh.pop %v243
  %v264 = vmul.f32 %v262, %v211
  %266 = vrot.lane.b32.xlu0 %v263, 64
  %v267 = vpop.permute.xlu0 %266
  %v269 = vmul.f32 %v262, %v267
  %271 = vrot.lane.b32.xlu0 %v269, 32
  %v272 = vpop.permute.xlu0 %271
  %v274 = vadd.f32 %v264, %v272
  %v275 = vtanh.pop %v274
  %277 = vrot.lane.b32.xlu0 %v275, 64
  %v278 = vpop.permute.xlu0 %277
  %v280 = vmul.f32 %v262, %v278
  %282 = vrot.lane.b32.xlu0 %v280, 32
  %v283 = vpop.permute.xlu0 %282
  %285 = vst.msk [vmem:[#allocation2 + $0x8] sm:$0xff] %vm163, %v283
  %v286 = vpack.c.bf16 %v280, %v280
  %288 = vrot.lane.b32.xlu0 %v286, 32
  %v289 = vpop.permute.xlu0 %288
  %v291 = vsel %vm163, %v289, 0
  %293 = vmatpush.bf16.msra.mxu0 0
  %294 = vmatpush.bf16.msra.mxu0 0
  %295 = vmatpush.bf16.msra.mxu0 0
  %296 = vmatpush.bf16.msra.mxu0 0
  %297 = vmatpush.bf16.msra.mxu0 0
  %298 = vmatpush.bf16.msra.mxu0 0
  %299 = vmatpush.bf16.msra.mxu0 %v160
  %300 = vmatpush.bf16.msra.mxu0 %v159
  %301 = vmatmul.bf16.gmra.mxu0 %v291
  %v302 = vpop.f32.mrf.mxu0
  %v303 = vadd.f32 0.0, %v302
  %v304 = vpop.f32.mrf.mxu0
  %305 = vdwg.mxu0
  %v306 = vadd.f32 %v130, %v303
  %v307 = vxor.u32 %v306, 2147483648
  %v308 = vmul.f32 %v307, 1.442695
  %v309 = vpow.pop %v308
  %v310 = vadd.f32 %v309, 1.0
  %v311 = vrcp.pop %v310
  %v312 = vmul.f32 %v310, %v311
  %v313 = vsub.f32 1.0, %v312
  %v314 = vmul.f32 %v311, %v313
  %v315 = vadd.f32 %v311, %v314
  %vm316 = vweird.f32 %v310
  %vm317 = vweird.f32 %v311
  %vm318 = vmor %vm316, %vm317
  %v319 = vsel %vm318, %v311, %v315
  %v320 = vand.u32 2147483647, %v310
  %vm321 = vcmp.eq.f32.partialorder %v320, 8.507059e+37
  %v322 = vand.u32 %v310, 2147483648
  %v323 = vor.u32 1.1754944e-38, %v322
  %v324 = vsel %vm321, %v323, %v319
  %v325 = vmul.f32 1.0, %v324
  %v326 = vtanh.pop %v306
  %v327 = vmul.f32 %v325, %v274
  %329 = vrot.lane.b32.xlu0 %v326, 64
  %v330 = vpop.permute.xlu0 %329
  %v332 = vmul.f32 %v325, %v330
  %334 = vrot.lane.b32.xlu0 %v332, 32
  %v335 = vpop.permute.xlu0 %334
  %v337 = vadd.f32 %v327, %v335
  %v338 = vtanh.pop %v337
  %340 = vrot.lane.b32.xlu0 %v338, 64
  %v341 = vpop.permute.xlu0 %340
  %v343 = vmul.f32 %v325, %v341
  %345 = vrot.lane.b32.xlu0 %v343, 32
  %v346 = vpop.permute.xlu0 %345
  %348 = vst.msk [vmem:[#allocation2 + $0x10] sm:$0xff] %vm163, %v346
  %v349 = vpack.c.bf16 %v343, %v343
  %351 = vrot.lane.b32.xlu0 %v349, 32
  %v352 = vpop.permute.xlu0 %351
  %v354 = vsel %vm163, %v352, 0
  %356 = vmatpush.bf16.msra.mxu0 0
  %357 = vmatpush.bf16.msra.mxu0 0
  %358 = vmatpush.bf16.msra.mxu0 0
  %359 = vmatpush.bf16.msra.mxu0 0
  %360 = vmatpush.bf16.msra.mxu0 0
  %361 = vmatpush.bf16.msra.mxu0 0
  %362 = vmatpush.bf16.msra.mxu0 %v160
  %363 = vmatpush.bf16.msra.mxu0 %v159
  %364 = vmatmul.bf16.gmra.mxu0 %v354
  %v365 = vpop.f32.mrf.mxu0
  %v366 = vadd.f32 0.0, %v365
  %v367 = vpop.f32.mrf.mxu0
  %368 = vdwg.mxu0
  %v369 = vadd.f32 %v133, %v366
  %v370 = vxor.u32 %v369, 2147483648
  %v371 = vmul.f32 %v370, 1.442695
  %v372 = vpow.pop %v371
  %v373 = vadd.f32 %v372, 1.0
  %v374 = vrcp.pop %v373
  %v375 = vmul.f32 %v373, %v374
  %v376 = vsub.f32 1.0, %v375
  %v377 = vmul.f32 %v374, %v376
  %v378 = vadd.f32 %v374, %v377
  %vm379 = vweird.f32 %v373
  %vm380 = vweird.f32 %v374
  %vm381 = vmor %vm379, %vm380
  %v382 = vsel %vm381, %v374, %v378
  %v383 = vand.u32 2147483647, %v373
  %vm384 = vcmp.eq.f32.partialorder %v383, 8.507059e+37
  %v385 = vand.u32 %v373, 2147483648
  %v386 = vor.u32 1.1754944e-38, %v385
  %v387 = vsel %vm384, %v386, %v382
  %v388 = vmul.f32 1.0, %v387
  %v389 = vtanh.pop %v369
  %v390 = vmul.f32 %v388, %v337
  %392 = vrot.lane.b32.xlu0 %v389, 64
  %v393 = vpop.permute.xlu0 %392
  %v395 = vmul.f32 %v388, %v393
  %397 = vrot.lane.b32.xlu0 %v395, 32
  %v398 = vpop.permute.xlu0 %397
  %v400 = vadd.f32 %v390, %v398
  %v401 = vtanh.pop %v400
  %403 = vrot.lane.b32.xlu0 %v401, 64
  %v404 = vpop.permute.xlu0 %403
  %v406 = vmul.f32 %v388, %v404
  %408 = vrot.lane.b32.xlu0 %v406, 32
  %v409 = vpop.permute.xlu0 %408
  %411 = vst.msk [vmem:[#allocation2 + $0x18] sm:$0xff] %vm163, %v409
  %v412 = vpack.c.bf16 %v406, %v406
  %414 = vrot.lane.b32.xlu0 %v412, 32
  %v415 = vpop.permute.xlu0 %414
  %v417 = vsel %vm163, %v415, 0
  %419 = vmatpush.bf16.msra.mxu0 0
  %420 = vmatpush.bf16.msra.mxu0 0
  %421 = vmatpush.bf16.msra.mxu0 0
  %422 = vmatpush.bf16.msra.mxu0 0
  %423 = vmatpush.bf16.msra.mxu0 0
  %424 = vmatpush.bf16.msra.mxu0 0
  %425 = vmatpush.bf16.msra.mxu0 %v160
  %426 = vmatpush.bf16.msra.mxu0 %v159
  %427 = vmatmul.bf16.gmra.mxu0 %v417
  %v428 = vpop.f32.mrf.mxu0
  %v429 = vadd.f32 0.0, %v428
  %v430 = vpop.f32.mrf.mxu0
  %431 = vdwg.mxu0
  %v432 = vadd.f32 %v136, %v429
  %v433 = vxor.u32 %v432, 2147483648
  %v434 = vmul.f32 %v433, 1.442695
  %v435 = vpow.pop %v434
  %v436 = vadd.f32 %v435, 1.0
  %v437 = vrcp.pop %v436
  %v438 = vmul.f32 %v436, %v437
  %v439 = vsub.f32 1.0, %v438
  %v440 = vmul.f32 %v437, %v439
  %v441 = vadd.f32 %v437, %v440
  %vm442 = vweird.f32 %v436
  %vm443 = vweird.f32 %v437
  %vm444 = vmor %vm442, %vm443
  %v445 = vsel %vm444, %v437, %v441
  %v446 = vand.u32 2147483647, %v436
  %vm447 = vcmp.eq.f32.partialorder %v446, 8.507059e+37
  %v448 = vand.u32 %v436, 2147483648
  %v449 = vor.u32 1.1754944e-38, %v448
  %v450 = vsel %vm447, %v449, %v445
  %v451 = vmul.f32 1.0, %v450
  %v452 = vtanh.pop %v432
  %v453 = vmul.f32 %v451, %v400
  %455 = vrot.lane.b32.xlu0 %v452, 64
  %v456 = vpop.permute.xlu0 %455
  %v458 = vmul.f32 %v451, %v456
  %460 = vrot.lane.b32.xlu0 %v458, 32
  %v461 = vpop.permute.xlu0 %460
  %v463 = vadd.f32 %v453, %v461
  %v464 = vtanh.pop %v463
  %466 = vrot.lane.b32.xlu0 %v464, 64
  %v467 = vpop.permute.xlu0 %466
  %v469 = vmul.f32 %v451, %v467
  %471 = vrot.lane.b32.xlu0 %v469, 32
  %v472 = vpop.permute.xlu0 %471
  %474 = vst.msk [vmem:[#allocation2 + $0x20] sm:$0xff] %vm163, %v472
  %v475 = vpack.c.bf16 %v469, %v469
  %477 = vrot.lane.b32.xlu0 %v475, 32
  %v478 = vpop.permute.xlu0 %477
  %v480 = vsel %vm163, %v478, 0
  %482 = vmatpush.bf16.msra.mxu0 0
  %483 = vmatpush.bf16.msra.mxu0 0
  %484 = vmatpush.bf16.msra.mxu0 0
  %485 = vmatpush.bf16.msra.mxu0 0
  %486 = vmatpush.bf16.msra.mxu0 0
  %487 = vmatpush.bf16.msra.mxu0 0
  %488 = vmatpush.bf16.msra.mxu0 %v160
  %489 = vmatpush.bf16.msra.mxu0 %v159
  %490 = vmatmul.bf16.gmra.mxu0 %v480
  %v491 = vpop.f32.mrf.mxu0
  %v492 = vadd.f32 0.0, %v491
  %v493 = vpop.f32.mrf.mxu0
  %494 = vdwg.mxu0
  %v495 = vadd.f32 %v139, %v492
  %v496 = vxor.u32 %v495, 2147483648
  %v497 = vmul.f32 %v496, 1.442695
  %v498 = vpow.pop %v497
  %v499 = vadd.f32 %v498, 1.0
  %v500 = vrcp.pop %v499
  %v501 = vmul.f32 %v499, %v500
  %v502 = vsub.f32 1.0, %v501
  %v503 = vmul.f32 %v500, %v502
  %v504 = vadd.f32 %v500, %v503
  %vm505 = vweird.f32 %v499
  %vm506 = vweird.f32 %v500
  %vm507 = vmor %vm505, %vm506
  %v508 = vsel %vm507, %v500, %v504
  %v509 = vand.u32 2147483647, %v499
  %vm510 = vcmp.eq.f32.partialorder %v509, 8.507059e+37
  %v511 = vand.u32 %v499, 2147483648
  %v512 = vor.u32 1.1754944e-38, %v511
  %v513 = vsel %vm510, %v512, %v508
  %v514 = vmul.f32 1.0, %v513
  %v515 = vtanh.pop %v495
  %v516 = vmul.f32 %v514, %v463
  %518 = vrot.lane.b32.xlu0 %v515, 64
  %v519 = vpop.permute.xlu0 %518
  %v521 = vmul.f32 %v514, %v519
  %523 = vrot.lane.b32.xlu0 %v521, 32
  %v524 = vpop.permute.xlu0 %523
  %v526 = vadd.f32 %v516, %v524
  %v527 = vtanh.pop %v526
  %529 = vrot.lane.b32.xlu0 %v527, 64
  %v530 = vpop.permute.xlu0 %529
  %v532 = vmul.f32 %v514, %v530
  %534 = vrot.lane.b32.xlu0 %v532, 32
  %v535 = vpop.permute.xlu0 %534
  %537 = vst.msk [vmem:[#allocation2 + $0x28] sm:$0xff] %vm163, %v535
  %v538 = vpack.c.bf16 %v532, %v532
  %540 = vrot.lane.b32.xlu0 %v538, 32
  %v541 = vpop.permute.xlu0 %540
  %v543 = vsel %vm163, %v541, 0
  %545 = vmatpush.bf16.msra.mxu0 0
  %546 = vmatpush.bf16.msra.mxu0 0
  %547 = vmatpush.bf16.msra.mxu0 0
  %548 = vmatpush.bf16.msra.mxu0 0
  %549 = vmatpush.bf16.msra.mxu0 0
  %550 = vmatpush.bf16.msra.mxu0 0
  %551 = vmatpush.bf16.msra.mxu0 %v160
  %552 = vmatpush.bf16.msra.mxu0 %v159
  %553 = vmatmul.bf16.gmra.mxu0 %v543
  %v554 = vpop.f32.mrf.mxu0
  %v555 = vadd.f32 0.0, %v554
  %v556 = vpop.f32.mrf.mxu0
  %557 = vdwg.mxu0
  %v558 = vadd.f32 %v142, %v555
  %v559 = vxor.u32 %v558, 2147483648
  %v560 = vmul.f32 %v559, 1.442695
  %v561 = vpow.pop %v560
  %v562 = vadd.f32 %v561, 1.0
  %v563 = vrcp.pop %v562
  %v564 = vmul.f32 %v562, %v563
  %v565 = vsub.f32 1.0, %v564
  %v566 = vmul.f32 %v563, %v565
  %v567 = vadd.f32 %v563, %v566
  %vm568 = vweird.f32 %v562
  %vm569 = vweird.f32 %v563
  %vm570 = vmor %vm568, %vm569
  %v571 = vsel %vm570, %v563, %v567
  %v572 = vand.u32 2147483647, %v562
  %vm573 = vcmp.eq.f32.partialorder %v572, 8.507059e+37
  %v574 = vand.u32 %v562, 2147483648
  %v575 = vor.u32 1.1754944e-38, %v574
  %v576 = vsel %vm573, %v575, %v571
  %v577 = vmul.f32 1.0, %v576
  %v578 = vtanh.pop %v558
  %v579 = vmul.f32 %v577, %v526
  %581 = vrot.lane.b32.xlu0 %v578, 64
  %v582 = vpop.permute.xlu0 %581
  %v584 = vmul.f32 %v577, %v582
  %586 = vrot.lane.b32.xlu0 %v584, 32
  %v587 = vpop.permute.xlu0 %586
  %v589 = vadd.f32 %v579, %v587
  %v590 = vtanh.pop %v589
  %592 = vrot.lane.b32.xlu0 %v590, 64
  %v593 = vpop.permute.xlu0 %592
  %v595 = vmul.f32 %v577, %v593
  %597 = vrot.lane.b32.xlu0 %v595, 32
  %v598 = vpop.permute.xlu0 %597
  %600 = vst.msk [vmem:[#allocation2 + $0x30] sm:$0xff] %vm163, %v598
  %v601 = vpack.c.bf16 %v595, %v595
  %603 = vrot.lane.b32.xlu0 %v601, 32
  %v604 = vpop.permute.xlu0 %603
  %v606 = vsel %vm163, %v604, 0
  %608 = vmatpush.bf16.msra.mxu0 0
  %609 = vmatpush.bf16.msra.mxu0 0
  %610 = vmatpush.bf16.msra.mxu0 0
  %611 = vmatpush.bf16.msra.mxu0 0
  %612 = vmatpush.bf16.msra.mxu0 0
  %613 = vmatpush.bf16.msra.mxu0 0
  %614 = vmatpush.bf16.msra.mxu0 %v160
  %615 = vmatpush.bf16.msra.mxu0 %v159
  %616 = vmatmul.bf16.gmra.mxu0 %v606
  %v617 = vpop.f32.mrf.mxu0
  %v618 = vadd.f32 0.0, %v617
  %v619 = vpop.f32.mrf.mxu0
  %620 = vdwg.mxu0
  %v621 = vadd.f32 %v145, %v618
  %v622 = vxor.u32 %v621, 2147483648
  %v623 = vmul.f32 %v622, 1.442695
  %v624 = vpow.pop %v623
  %v625 = vadd.f32 %v624, 1.0
  %v626 = vrcp.pop %v625
  %v627 = vmul.f32 %v625, %v626
  %v628 = vsub.f32 1.0, %v627
  %v629 = vmul.f32 %v626, %v628
  %v630 = vadd.f32 %v626, %v629
  %vm631 = vweird.f32 %v625
  %vm632 = vweird.f32 %v626
  %vm633 = vmor %vm631, %vm632
  %v634 = vsel %vm633, %v626, %v630
  %v635 = vand.u32 2147483647, %v625
  %vm636 = vcmp.eq.f32.partialorder %v635, 8.507059e+37
  %v637 = vand.u32 %v625, 2147483648
  %v638 = vor.u32 1.1754944e-38, %v637
  %v639 = vsel %vm636, %v638, %v634
  %v640 = vmul.f32 1.0, %v639
  %v641 = vtanh.pop %v621
  %v642 = vmul.f32 %v640, %v589
  %644 = vrot.lane.b32.xlu0 %v641, 64
  %v645 = vpop.permute.xlu0 %644
  %v647 = vmul.f32 %v640, %v645
  %649 = vrot.lane.b32.xlu0 %v647, 32
  %v650 = vpop.permute.xlu0 %649
  %v652 = vadd.f32 %v642, %v650
  %v653 = vtanh.pop %v652
  %655 = vrot.lane.b32.xlu0 %v653, 64
  %v656 = vpop.permute.xlu0 %655
  %v658 = vmul.f32 %v640, %v656
  %660 = vrot.lane.b32.xlu0 %v658, 32
  %v661 = vpop.permute.xlu0 %660
  %663 = vst.msk [vmem:[#allocation2 + $0x38] sm:$0xff] %vm163, %v661
  %v664 = vld [vmem:[#allocation2] sm:$0xff]
  %v665 = vld [vmem:[#allocation2 + $0x8] sm:$0xff]
  %v666 = vld [vmem:[#allocation2 + $0x10] sm:$0xff]
  %v667 = vld [vmem:[#allocation2 + $0x18] sm:$0xff]
  %v668 = vld [vmem:[#allocation2 + $0x20] sm:$0xff]
  %v669 = vld [vmem:[#allocation2 + $0x28] sm:$0xff]
  %v670 = vld [vmem:[#allocation2 + $0x30] sm:$0xff]
  %v671 = vld [vmem:[#allocation2 + $0x38] sm:$0xff]
  %v672 = vld [vmem:[%s3] sm:$0xff]
  %v673 = vld [vmem:[%s3 + $0x8] sm:$0xff]
  %v674 = vld [vmem:[%s3 + $0x10] sm:$0xff]
  %v675 = vld [vmem:[%s3 + $0x18] sm:$0xff]
  %v676 = vld [vmem:[%s4] sm:$0x1]
  %v678 = vperm.slane %v676, 0
  %v681 = vsel %vm163, %v664, 0
  %v684 = vsel %vm163, %v665, 0
  %v687 = vsel %vm163, %v666, 0
  %v690 = vsel %vm163, %v667, 0
  %v693 = vsel %vm163, %v668, 0
  %v696 = vsel %vm163, %v669, 0
  %v699 = vsel %vm163, %v670, 0
  %v702 = vsel %vm163, %v671, 0
  %704 = vmatpush.msra.mxu0 0.0
  %705 = vmatpush.msra.mxu0 0.0
  %706 = vmatpush.msra.mxu0 0.0
  %707 = vmatpush.msra.mxu0 0.0
  %708 = vmatpush.msra.mxu0 0.0
  %709 = vmatpush.msra.mxu0 0.0
  %710 = vmatpush.msra.mxu0 0.0
  %711 = vmatpush.msra.mxu0 0.0
  %712 = vmatpush.msra.mxu0 0.0
  %713 = vmatpush.msra.mxu0 0.0
  %714 = vmatpush.msra.mxu0 0.0
  %715 = vmatpush.msra.mxu0 0.0
  %716 = vmatpush.msra.mxu0 %v675
  %717 = vmatpush.msra.mxu0 %v674
  %718 = vmatpush.msra.mxu0 %v673
  %719 = vmatpush.msra.mxu0 %v672
  %720 = vmatmul.f32.gmra.mxu0 %v681
  %v721 = vpop.f32.mrf.mxu0
  %v722 = vadd.f32 %v678, %v721
  %723 = vmatmul.f32.gmra.mxu0 %v684
  %v724 = vpop.f32.mrf.mxu0
  %v725 = vadd.f32 %v678, %v724
  %726 = vmatmul.f32.gmra.mxu0 %v687
  %v727 = vpop.f32.mrf.mxu0
  %v728 = vadd.f32 %v678, %v727
  %729 = vmatmul.f32.gmra.mxu0 %v690
  %v730 = vpop.f32.mrf.mxu0
  %v731 = vadd.f32 %v678, %v730
  %732 = vmatmul.f32.gmra.mxu0 %v693
  %v733 = vpop.f32.mrf.mxu0
  %v734 = vadd.f32 %v678, %v733
  %735 = vmatmul.f32.gmra.mxu0 %v696
  %v736 = vpop.f32.mrf.mxu0
  %v737 = vadd.f32 %v678, %v736
  %738 = vmatmul.f32.gmra.mxu0 %v699
  %v739 = vpop.f32.mrf.mxu0
  %v740 = vadd.f32 %v678, %v739
  %741 = vmatmul.f32.gmra.mxu0 %v702
  %v742 = vpop.f32.mrf.mxu0
  %v743 = vadd.f32 %v678, %v742
  %744 = vdwg.mxu0
  %753 = vrot.lane.b32.xlu0 %v722, 127
  %v754 = vpop.permute.xlu0 %753
  %755 = vrot.lane.b32.xlu0 %v725, 127
  %v756 = vpop.permute.xlu0 %755
  %757 = vrot.lane.b32.xlu0 %v728, 127
  %v758 = vpop.permute.xlu0 %757
  %759 = vrot.lane.b32.xlu0 %v731, 127
  %v760 = vpop.permute.xlu0 %759
  %761 = vrot.lane.b32.xlu0 %v734, 127
  %v762 = vpop.permute.xlu0 %761
  %763 = vrot.lane.b32.xlu0 %v737, 127
  %v764 = vpop.permute.xlu0 %763
  %765 = vrot.lane.b32.xlu0 %v740, 127
  %v766 = vpop.permute.xlu0 %765
  %767 = vrot.lane.b32.xlu0 %v743, 127
  %v768 = vpop.permute.xlu0 %767
  %v777 = vmax.f32 %v722, %v754
  %v778 = vmax.f32 %v725, %v756
  %v779 = vmax.f32 %v728, %v758
  %v780 = vmax.f32 %v731, %v760
  %v781 = vmax.f32 %v734, %v762
  %v782 = vmax.f32 %v737, %v764
  %v783 = vmax.f32 %v740, %v766
  %v784 = vmax.f32 %v743, %v768
  %785 = vrot.lane.b32.xlu0 %v722, 1
  %v786 = vpop.permute.xlu0 %785
  %787 = vrot.lane.b32.xlu0 %v725, 1
  %v788 = vpop.permute.xlu0 %787
  %789 = vrot.lane.b32.xlu0 %v728, 1
  %v790 = vpop.permute.xlu0 %789
  %791 = vrot.lane.b32.xlu0 %v731, 1
  %v792 = vpop.permute.xlu0 %791
  %793 = vrot.lane.b32.xlu0 %v734, 1
  %v794 = vpop.permute.xlu0 %793
  %795 = vrot.lane.b32.xlu0 %v737, 1
  %v796 = vpop.permute.xlu0 %795
  %797 = vrot.lane.b32.xlu0 %v740, 1
  %v798 = vpop.permute.xlu0 %797
  %799 = vrot.lane.b32.xlu0 %v743, 1
  %v800 = vpop.permute.xlu0 %799
  %v809 = vsub.f32 %v722, %v786
  %v810 = vsub.f32 %v725, %v788
  %v811 = vsub.f32 %v728, %v790
  %v812 = vsub.f32 %v731, %v792
  %v813 = vsub.f32 %v734, %v794
  %v814 = vsub.f32 %v737, %v796
  %v815 = vsub.f32 %v740, %v798
  %v816 = vsub.f32 %v743, %v800
  %v817 = vand.u32 2147483647, %v809
  %v818 = vand.u32 2147483647, %v810
  %v819 = vand.u32 2147483647, %v811
  %v820 = vand.u32 2147483647, %v812
  %v821 = vand.u32 2147483647, %v813
  %v822 = vand.u32 2147483647, %v814
  %v823 = vand.u32 2147483647, %v815
  %v824 = vand.u32 2147483647, %v816
  %v825 = vsub.f32 0.0, %v817
  %v826 = vsub.f32 0.0, %v818
  %v827 = vsub.f32 0.0, %v819
  %v828 = vsub.f32 0.0, %v820
  %v829 = vsub.f32 0.0, %v821
  %v830 = vsub.f32 0.0, %v822
  %v831 = vsub.f32 0.0, %v823
  %v832 = vsub.f32 0.0, %v824
  %v833 = vmul.f32 %v825, 1.442695
  %v834 = vpow.pop %v833
  %v835 = vmul.f32 %v826, 1.442695
  %v836 = vpow.pop %v835
  %v837 = vmul.f32 %v827, 1.442695
  %v838 = vpow.pop %v837
  %v839 = vmul.f32 %v828, 1.442695
  %v840 = vpow.pop %v839
  %v841 = vmul.f32 %v829, 1.442695
  %v842 = vpow.pop %v841
  %v843 = vmul.f32 %v830, 1.442695
  %v844 = vpow.pop %v843
  %v845 = vmul.f32 %v831, 1.442695
  %v846 = vpow.pop %v845
  %v847 = vmul.f32 %v832, 1.442695
  %v848 = vpow.pop %v847
  %v849 = vadd.f32 %v834, 1.0
  %v850 = vadd.f32 %v836, 1.0
  %v851 = vadd.f32 %v838, 1.0
  %v852 = vadd.f32 %v840, 1.0
  %v853 = vadd.f32 %v842, 1.0
  %v854 = vadd.f32 %v844, 1.0
  %v855 = vadd.f32 %v846, 1.0
  %v856 = vadd.f32 %v848, 1.0
  %vm857 = vcmp.eq.f32.partialorder %v849, 1.0
  %vm858 = vcmp.eq.f32.partialorder %v850, 1.0
  %vm859 = vcmp.eq.f32.partialorder %v851, 1.0
  %vm860 = vcmp.eq.f32.partialorder %v852, 1.0
  %vm861 = vcmp.eq.f32.partialorder %v853, 1.0
  %vm862 = vcmp.eq.f32.partialorder %v854, 1.0
  %vm863 = vcmp.eq.f32.partialorder %v855, 1.0
  %vm864 = vcmp.eq.f32.partialorder %v856, 1.0
  %v865 = vlog2.pop %v849
  %v866 = vmul.f32 %v865, 0.6931472
  %v867 = vlog2.pop %v850
  %v868 = vmul.f32 %v867, 0.6931472
  %v869 = vlog2.pop %v851
  %v870 = vmul.f32 %v869, 0.6931472
  %v871 = vlog2.pop %v852
  %v872 = vmul.f32 %v871, 0.6931472
  %v873 = vlog2.pop %v853
  %v874 = vmul.f32 %v873, 0.6931472
  %v875 = vlog2.pop %v854
  %v876 = vmul.f32 %v875, 0.6931472
  %v877 = vlog2.pop %v855
  %v878 = vmul.f32 %v877, 0.6931472
  %v879 = vlog2.pop %v856
  %v880 = vmul.f32 %v879, 0.6931472
  %v881 = vsub.f32 %v849, 1.0
  %v882 = vsub.f32 %v850, 1.0
  %v883 = vsub.f32 %v851, 1.0
  %v884 = vsub.f32 %v852, 1.0
  %v885 = vsub.f32 %v853, 1.0
  %v886 = vsub.f32 %v854, 1.0
  %v887 = vsub.f32 %v855, 1.0
  %v888 = vsub.f32 %v856, 1.0
  %v889 = vrcp.pop %v881
  %v890 = vmul.f32 %v881, %v889
  %v891 = vsub.f32 1.0, %v890
  %v892 = vmul.f32 %v889, %v891
  %v893 = vadd.f32 %v889, %v892
  %vm894 = vweird.f32 %v881
  %vm895 = vweird.f32 %v889
  %vm896 = vmor %vm894, %vm895
  %v897 = vsel %vm896, %v889, %v893
  %v898 = vand.u32 2147483647, %v881
  %vm899 = vcmp.eq.f32.partialorder %v898, 8.507059e+37
  %v900 = vand.u32 %v881, 2147483648
  %v901 = vor.u32 1.1754944e-38, %v900
  %v902 = vsel %vm899, %v901, %v897
  %v903 = vmul.f32 %v834, %v902
  %v904 = vrcp.pop %v882
  %v905 = vmul.f32 %v882, %v904
  %v906 = vsub.f32 1.0, %v905
  %v907 = vmul.f32 %v904, %v906
  %v908 = vadd.f32 %v904, %v907
  %vm909 = vweird.f32 %v882
  %vm910 = vweird.f32 %v904
  %vm911 = vmor %vm909, %vm910
  %v912 = vsel %vm911, %v904, %v908
  %v913 = vand.u32 2147483647, %v882
  %vm914 = vcmp.eq.f32.partialorder %v913, 8.507059e+37
  %v915 = vand.u32 %v882, 2147483648
  %v916 = vor.u32 1.1754944e-38, %v915
  %v917 = vsel %vm914, %v916, %v912
  %v918 = vmul.f32 %v836, %v917
  %v919 = vrcp.pop %v883
  %v920 = vmul.f32 %v883, %v919
  %v921 = vsub.f32 1.0, %v920
  %v922 = vmul.f32 %v919, %v921
  %v923 = vadd.f32 %v919, %v922
  %vm924 = vweird.f32 %v883
  %vm925 = vweird.f32 %v919
  %vm926 = vmor %vm924, %vm925
  %v927 = vsel %vm926, %v919, %v923
  %v928 = vand.u32 2147483647, %v883
  %vm929 = vcmp.eq.f32.partialorder %v928, 8.507059e+37
  %v930 = vand.u32 %v883, 2147483648
  %v931 = vor.u32 1.1754944e-38, %v930
  %v932 = vsel %vm929, %v931, %v927
  %v933 = vmul.f32 %v838, %v932
  %v934 = vrcp.pop %v884
  %v935 = vmul.f32 %v884, %v934
  %v936 = vsub.f32 1.0, %v935
  %v937 = vmul.f32 %v934, %v936
  %v938 = vadd.f32 %v934, %v937
  %vm939 = vweird.f32 %v884
  %vm940 = vweird.f32 %v934
  %vm941 = vmor %vm939, %vm940
  %v942 = vsel %vm941, %v934, %v938
  %v943 = vand.u32 2147483647, %v884
  %vm944 = vcmp.eq.f32.partialorder %v943, 8.507059e+37
  %v945 = vand.u32 %v884, 2147483648
  %v946 = vor.u32 1.1754944e-38, %v945
  %v947 = vsel %vm944, %v946, %v942
  %v948 = vmul.f32 %v840, %v947
  %v949 = vrcp.pop %v885
  %v950 = vmul.f32 %v885, %v949
  %v951 = vsub.f32 1.0, %v950
  %v952 = vmul.f32 %v949, %v951
  %v953 = vadd.f32 %v949, %v952
  %vm954 = vweird.f32 %v885
  %vm955 = vweird.f32 %v949
  %vm956 = vmor %vm954, %vm955
  %v957 = vsel %vm956, %v949, %v953
  %v958 = vand.u32 2147483647, %v885
  %vm959 = vcmp.eq.f32.partialorder %v958, 8.507059e+37
  %v960 = vand.u32 %v885, 2147483648
  %v961 = vor.u32 1.1754944e-38, %v960
  %v962 = vsel %vm959, %v961, %v957
  %v963 = vmul.f32 %v842, %v962
  %v964 = vrcp.pop %v886
  %v965 = vmul.f32 %v886, %v964
  %v966 = vsub.f32 1.0, %v965
  %v967 = vmul.f32 %v964, %v966
  %v968 = vadd.f32 %v964, %v967
  %vm969 = vweird.f32 %v886
  %vm970 = vweird.f32 %v964
  %vm971 = vmor %vm969, %vm970
  %v972 = vsel %vm971, %v964, %v968
  %v973 = vand.u32 2147483647, %v886
  %vm974 = vcmp.eq.f32.partialorder %v973, 8.507059e+37
  %v975 = vand.u32 %v886, 2147483648
  %v976 = vor.u32 1.1754944e-38, %v975
  %v977 = vsel %vm974, %v976, %v972
  %v978 = vmul.f32 %v844, %v977
  %v979 = vrcp.pop %v887
  %v980 = vmul.f32 %v887, %v979
  %v981 = vsub.f32 1.0, %v980
  %v982 = vmul.f32 %v979, %v981
  %v983 = vadd.f32 %v979, %v982
  %vm984 = vweird.f32 %v887
  %vm985 = vweird.f32 %v979
  %vm986 = vmor %vm984, %vm985
  %v987 = vsel %vm986, %v979, %v983
  %v988 = vand.u32 2147483647, %v887
  %vm989 = vcmp.eq.f32.partialorder %v988, 8.507059e+37
  %v990 = vand.u32 %v887, 2147483648
  %v991 = vor.u32 1.1754944e-38, %v990
  %v992 = vsel %vm989, %v991, %v987
  %v993 = vmul.f32 %v846, %v992
  %v994 = vrcp.pop %v888
  %v995 = vmul.f32 %v888, %v994
  %v996 = vsub.f32 1.0, %v995
  %v997 = vmul.f32 %v994, %v996
  %v998 = vadd.f32 %v994, %v997
  %vm999 = vweird.f32 %v888
  %vm1000 = vweird.f32 %v994
  %vm1001 = vmor %vm999, %vm1000
  %v1002 = vsel %vm1001, %v994, %v998
  %v1003 = vand.u32 2147483647, %v888
  %vm1004 = vcmp.eq.f32.partialorder %v1003, 8.507059e+37
  %v1005 = vand.u32 %v888, 2147483648
  %v1006 = vor.u32 1.1754944e-38, %v1005
  %v1007 = vsel %vm1004, %v1006, %v1002
  %v1008 = vmul.f32 %v848, %v1007
  %v1009 = vmul.f32 %v866, %v903
  %v1010 = vmul.f32 %v868, %v918
  %v1011 = vmul.f32 %v870, %v933
  %v1012 = vmul.f32 %v872, %v948
  %v1013 = vmul.f32 %v874, %v963
  %v1014 = vmul.f32 %v876, %v978
  %v1015 = vmul.f32 %v878, %v993
  %v1016 = vmul.f32 %v880, %v1008
  %v1017 = vsel %vm857, %v834, %v1009
  %v1018 = vsel %vm858, %v836, %v1010
  %v1019 = vsel %vm859, %v838, %v1011
  %v1020 = vsel %vm860, %v840, %v1012
  %v1021 = vsel %vm861, %v842, %v1013
  %v1022 = vsel %vm862, %v844, %v1014
  %v1023 = vsel %vm863, %v846, %v1015
  %v1024 = vsel %vm864, %v848, %v1016
  %1033 = vrot.lane.b32.xlu0 %v1017, 127
  %v1034 = vpop.permute.xlu0 %1033
  %1035 = vrot.lane.b32.xlu0 %v1018, 127
  %v1036 = vpop.permute.xlu0 %1035
  %1037 = vrot.lane.b32.xlu0 %v1019, 127
  %v1038 = vpop.permute.xlu0 %1037
  %1039 = vrot.lane.b32.xlu0 %v1020, 127
  %v1040 = vpop.permute.xlu0 %1039
  %1041 = vrot.lane.b32.xlu0 %v1021, 127
  %v1042 = vpop.permute.xlu0 %1041
  %1043 = vrot.lane.b32.xlu0 %v1022, 127
  %v1044 = vpop.permute.xlu0 %1043
  %1045 = vrot.lane.b32.xlu0 %v1023, 127
  %v1046 = vpop.permute.xlu0 %1045
  %1047 = vrot.lane.b32.xlu0 %v1024, 127
  %v1048 = vpop.permute.xlu0 %1047
  %v1057 = vadd.f32 %v777, %v1034
  %v1058 = vadd.f32 %v778, %v1036
  %v1059 = vadd.f32 %v779, %v1038
  %v1060 = vadd.f32 %v780, %v1040
  %v1061 = vadd.f32 %v781, %v1042
  %v1062 = vadd.f32 %v782, %v1044
  %v1063 = vadd.f32 %v783, %v1046
  %v1064 = vadd.f32 %v784, %v1048
  %1066 = vset.pattern.permute.xlu0 0
  %1067 = vperm.xlu0 %1066, %v1057
  %v1068 = vpop.permute.xlu0 %1067
  %1071 = vset.pattern.permute.xlu0 0
  %1072 = vperm.xlu0 %1071, %v1058
  %v1073 = vpop.permute.xlu0 %1072
  %1076 = vset.pattern.permute.xlu0 0
  %1077 = vperm.xlu0 %1076, %v1059
  %v1078 = vpop.permute.xlu0 %1077
  %1081 = vset.pattern.permute.xlu0 0
  %1082 = vperm.xlu0 %1081, %v1060
  %v1083 = vpop.permute.xlu0 %1082
  %1086 = vset.pattern.permute.xlu0 0
  %1087 = vperm.xlu0 %1086, %v1061
  %v1088 = vpop.permute.xlu0 %1087
  %1091 = vset.pattern.permute.xlu0 0
  %1092 = vperm.xlu0 %1091, %v1062
  %v1093 = vpop.permute.xlu0 %1092
  %1096 = vset.pattern.permute.xlu0 0
  %1097 = vperm.xlu0 %1096, %v1063
  %v1098 = vpop.permute.xlu0 %1097
  %1101 = vset.pattern.permute.xlu0 0
  %1102 = vperm.xlu0 %1101, %v1064
  %v1103 = vpop.permute.xlu0 %1102
  %v1105 = vsub.f32 %v722, %v1068
  %v1106 = vsub.f32 %v725, %v1073
  %v1107 = vsub.f32 %v728, %v1078
  %v1108 = vsub.f32 %v731, %v1083
  %v1109 = vsub.f32 %v734, %v1088
  %v1110 = vsub.f32 %v737, %v1093
  %v1111 = vsub.f32 %v740, %v1098
  %v1112 = vsub.f32 %v743, %v1103
  %vm1113 = vcmask 15360
  %1114 = vst.msk [vmem:[%s5] sm:$0xff] %vm1113, %v1105
  %1115 = vst.msk [vmem:[%s5 + $0x8] sm:$0xff] %vm1113, %v1106
  %1116 = vst.msk [vmem:[%s5 + $0x10] sm:$0xff] %vm1113, %v1107
  %1117 = vst.msk [vmem:[%s5 + $0x18] sm:$0xff] %vm1113, %v1108
  %1118 = vst.msk [vmem:[%s5 + $0x20] sm:$0xff] %vm1113, %v1109
  %1119 = vst.msk [vmem:[%s5 + $0x28] sm:$0xff] %vm1113, %v1110
  %1120 = vst.msk [vmem:[%s5 + $0x30] sm:$0xff] %vm1113, %v1111
  %1121 = vst.msk [vmem:[%s5 + $0x38] sm:$0xff] %vm1113, %v1112
  // Predicated region
  $region22: #{lstm_tagger_forward.1} parent=0 // pred_check
    _
  $region23: #{lstm_tagger_forward.1} parent=0 // pred_check_branch
    %1123 = sbr.rel (0) target = $region25
  $region24: #{lstm_tagger_forward.1} parent=0 // pred_region
    _
  $region25: #{lstm_tagger_forward.1} parent=0 // pred_fallthru
    _
  // Predicated region
  $region26: #{lstm_tagger_forward.1} parent=0 // pred_check
    _
  $region27: #{lstm_tagger_forward.1} parent=0 // pred_check_branch
    %1125 = sbr.rel (0) target = $region29
  $region28: #{lstm_tagger_forward.1} parent=0 // pred_region
    _
  $region29: #{lstm_tagger_forward.1} parent=0 // pred_fallthru
    _

</llo_original>
